<compile_context>
chip_gen: v7x
topology: tpu7x:2x2x1
jax: 0.10.0
libtpu: 0.0.40
codegen_flags: <defaults>
</compile_context>

<pallas_src>
import functools
import math

import jax
import jax.numpy as jnp
from jax import lax
from jax.experimental import pallas as pl
from jax.experimental.pallas import tpu as pltpu


def _light_attention_kernel(
    gamma_ref,      # SMEM (1,) f32
    xq_ref,         # VMEM (1, tq, Dp) f32   -- query-side x block (also residual)
    xkv_ref,        # VMEM (1, tk, Dp) bf16  -- key/value-side x block (bf16 stream)
    wg_ref,         # VMEM (Dp, Dp) bf16     -- (Wq^T @ Wk) / sqrt(D), zero-padded
    bg_ref,         # VMEM (1, Dp) f32       -- (bq @ Wk) / sqrt(D),  zero-padded
    o_ref,          # VMEM (1, tq, Dp) f32
    g_scr,          # VMEM (tq, Dp) bf16     -- cached per-query-tile G
    m_scr,          # VMEM (tq, 1) f32       -- running max
    l_scr,          # VMEM (tq, 1) f32       -- running sum
    acc_scr,        # VMEM (tq, Dp) f32      -- output accumulator
    *,
    seq_len,        # static: true (unpadded) sequence length T
    kv_tile,        # static: tk
    mask_kv,        # static: whether the kv axis is padded past seq_len
):
    ki = pl.program_id(2)
    nk = pl.num_programs(2)

    # --- per-query-tile init (once per (b, qi), on the first kv step) ---
    @pl.when(ki == 0)
    def _():
        xq_bf = xq_ref[0].astype(jnp.bfloat16)                     # (tq, Dp)
        g = jnp.dot(xq_bf, wg_ref[...],
                    preferred_element_type=jnp.float32) + bg_ref[...]
        g_scr[...] = g.astype(jnp.bfloat16)
        m_scr[...] = jnp.full_like(m_scr, -jnp.inf)
        l_scr[...] = jnp.zeros_like(l_scr)
        acc_scr[...] = jnp.zeros_like(acc_scr)

    # --- online-softmax update for this kv tile ---
    xkv_bf = xkv_ref[0]                                            # (tk, Dp) bf16
    # scores (tq, tk): contract G's feature dim with x_kv's feature dim (A @ B^T)
    s = lax.dot_general(g_scr[...], xkv_bf,
                        dimension_numbers=(((1,), (1,)), ((), ())),
                        preferred_element_type=jnp.float32)

    if mask_kv:
        # Zero-padded kv rows give s = 0 (not -inf): must be masked before max/exp.
        col = ki * kv_tile + lax.broadcasted_iota(jnp.int32, (1, kv_tile), 1)
        s = jnp.where(col < seq_len, s, -jnp.inf)

    m_prev = m_scr[...]
    m_new = jnp.maximum(m_prev, s.max(axis=-1, keepdims=True))
    alpha = jnp.exp(m_prev - m_new)
    p = jnp.exp(s - m_new)
    l_scr[...] = alpha * l_scr[...] + p.sum(axis=-1, keepdims=True)
    acc_scr[...] = alpha * acc_scr[...] + jnp.dot(
        p.astype(jnp.bfloat16), xkv_bf, preferred_element_type=jnp.float32)
    m_scr[...] = m_new

    # --- finalize: normalize, gate with gamma, add residual ---
    @pl.when(ki == nk - 1)
    def _():
        inv_l = pl.reciprocal(l_scr[...], approx=True)             # EUP slot
        gamma = gamma_ref[0]
        out = xq_ref[0] + gamma * (acc_scr[...] * inv_l)
        o_ref[0] = out.astype(o_ref.dtype)


def _round_up(n, m):
    return ((n + m - 1) // m) * m


def _choose_tiles(B, T, tq_pref=256, tk_pref=512):
    """Pick (tq, tk).  Sequence axes are padded up to these, so any T works."""
    if T <= tq_pref:
        tq = _round_up(max(T, 1), 8)
    else:
        tq = tq_pref
        # v7x megacore: keep >= 4 parallel grid points (B * n_q_tiles) so both
        # TensorCores have work; shrink tq (never below 128) rather than grow it.
        if B * ((T + tq - 1) // tq) < 4 and tq > 128:
            tq = 128
    if T <= tk_pref:
        tk = _round_up(max(T, 1), 8)
    else:
        tk = tk_pref   # large kv tile amortizes per-grid-step overhead
    return tq, tk


def light_attention(x, wq, bq, wk, bk, gamma, *, tq=None, tk=None):
    """x: (B, T, D) float32. wq/wk: (D, D) as in nn.Linear (out, in). bq/bk: (D,)."""
    B, T, D = x.shape
    inv_sqrt_d = 1.0 / math.sqrt(D)

    # Pre-compose projections + scale on the host.
    #   Q @ K^T / sqrt(D) == (x_q @ Wg + bg) @ x_kv^T + (per-query-row constant)
    # The dropped constant involves only bk and is exactly softmax-invariant.
    wq_f = wq.astype(jnp.float32)
    wk_f = wk.astype(jnp.float32)
    wg = (wq_f.T @ wk_f) * inv_sqrt_d                              # (D, D)
    bg = (bq.astype(jnp.float32) @ wk_f) * inv_sqrt_d              # (D,)

    # Lane-dense layout: pad feature dim to a multiple of 128 (zero pad is exact:
    # padded features are zero in x, Wg, bg, so they contribute nothing).
    Dp = _round_up(D, 128)
    pad_d = Dp - D

    tq_, tk_ = _choose_tiles(B, T)
    if tq is not None:
        tq_ = tq
    if tk is not None:
        tk_ = tk

    # Pad both sequence axes up to a multiple of their tiles (no tile=T fallback).
    Tq_pad = _round_up(T, tq_)
    Tk_pad = _round_up(T, tk_)
    mask_kv = Tk_pad > T

    x_f32 = x.astype(jnp.float32)
    # Query-side stream stays f32 (residual add); kv-side stream is bf16 (halves
    # the dominant, re-read HBM traffic).
    x_q = jnp.pad(x_f32, ((0, 0), (0, Tq_pad - T), (0, pad_d)))
    x_kv = jnp.pad(x_f32.astype(jnp.bfloat16),
                   ((0, 0), (0, Tk_pad - T), (0, pad_d)))
    wg_p = jnp.pad(wg, ((0, pad_d), (0, pad_d))).astype(jnp.bfloat16)
    bg_p = jnp.pad(bg, (0, pad_d)).reshape(1, Dp).astype(jnp.float32)
    gamma1 = jnp.asarray(gamma, jnp.float32).reshape(1)

    grid = (B, Tq_pad // tq_, Tk_pad // tk_)

    kernel = functools.partial(_light_attention_kernel,
                               seq_len=T, kv_tile=tk_, mask_kv=mask_kv)

    out_p = pl.pallas_call(
        kernel,
        out_shape=jax.ShapeDtypeStruct((B, Tq_pad, Dp), jnp.float32),
        grid_spec=pltpu.PrefetchScalarGridSpec(
            num_scalar_prefetch=0,
            grid=grid,
            in_specs=[
                pl.BlockSpec(memory_space=pltpu.MemorySpace.SMEM),            # gamma
                pl.BlockSpec((1, tq_, Dp), lambda b, qi, ki: (b, qi, 0)),     # x  (query side, f32)
                pl.BlockSpec((1, tk_, Dp), lambda b, qi, ki: (b, ki, 0)),     # x  (kv side, bf16)
                pl.BlockSpec((Dp, Dp), lambda b, qi, ki: (0, 0)),             # Wg (bf16, constant)
                pl.BlockSpec((1, Dp), lambda b, qi, ki: (0, 0)),              # bg
            ],
            out_specs=pl.BlockSpec((1, tq_, Dp), lambda b, qi, ki: (b, qi, 0)),
            scratch_shapes=[
                pltpu.VMEM((tq_, Dp), jnp.bfloat16),   # G cache
                pltpu.VMEM((tq_, 1), jnp.float32),     # running max
                pltpu.VMEM((tq_, 1), jnp.float32),     # running sum
                pltpu.VMEM((tq_, Dp), jnp.float32),    # output accumulator
            ],
        ),
        compiler_params=pltpu.CompilerParams(
            dimension_semantics=("parallel", "parallel", "arbitrary"),
            vmem_limit_bytes=48 * 1024 * 1024,   # headroom under v7x's 64 MiB/TC
        ),
    )(gamma1, x_q, x_kv, wg_p, bg_p)

    return out_p[:, :T, :D]


def light_attention_ref(x, wq, bq, wk, bk, gamma):
    """Pure-JAX f32 reference mirroring the PyTorch forward (eval mode)."""
    D = x.shape[-1]
    q = jnp.einsum("btd,ed->bte", x, wq) + bq
    k = jnp.einsum("btd,ed->bte", x, wk) + bk
    scores = jnp.einsum("bqd,bkd->bqk", q, k) / math.sqrt(D)
    attn = jax.nn.softmax(scores, axis=-1)
    return x + gamma * jnp.einsum("bqk,bkd->bqd", attn, x)


def _make_params(key, D):
    kwq, kbq, kwk, kbk = jax.random.split(key, 4)
    bound = 1.0 / math.sqrt(D)  # nn.Linear default init
    wq = jax.random.uniform(kwq, (D, D), jnp.float32, -bound, bound)
    bq = jax.random.uniform(kbq, (D,), jnp.float32, -bound, bound)
    wk = jax.random.uniform(kwk, (D, D), jnp.float32, -bound, bound)
    bk = jax.random.uniform(kbk, (D,), jnp.float32, -bound, bound)
    return wq, bq, wk, bk


if __name__ == "__main__":
    key = jax.random.PRNGKey(0)
    k1, k2, kp1, kp2 = jax.random.split(key, 4)

    # __init__ sets gamma = 0; use a nonzero value so the attention path is exercised.
    gamma = 0.5

    # Case 1: small module-consistent shapes (batch=2, seq=8, d_model=32).
    B, T, D = 2, 8, 32
    x = jax.random.normal(k1, (B, T, D), dtype=jnp.float32)
    wq, bq, wk, bk = _make_params(kp1, D)
    out = jax.block_until_ready(light_attention(x, wq, bq, wk, bk, gamma))
    ref = light_attention_ref(x, wq, bq, wk, bk, gamma)
    assert out.shape == (B, T, D)
    # bf16 MXU operands, composed (Wq^T Wk), and approx reciprocal => ~1e-3..1e-2 rel err.
    max_err = float(jnp.max(jnp.abs(out - ref)))
    assert max_err < 5e-2, f"case1 mismatch vs reference: max abs err = {max_err}"

    # Case 2: exercises multi-kv-tile streaming + kv padding/masking + tq shrink.
    B2, T2, D2 = 1, 640, 32
    x2 = jax.random.normal(k2, (B2, T2, D2), dtype=jnp.float32)
    wq2, bq2, wk2, bk2 = _make_params(kp2, D2)
    out2 = jax.block_until_ready(light_attention(x2, wq2, bq2, wk2, bk2, gamma))
    ref2 = light_attention_ref(x2, wq2, bq2, wk2, bk2, gamma)
    assert out2.shape == (B2, T2, D2)
    max_err2 = float(jnp.max(jnp.abs(out2 - ref2)))
    assert max_err2 < 5e-2, f"case2 mismatch vs reference: max abs err = {max_err2}"

    print("KERNEL_OK")
</pallas_src>

<mosaic_0001>
module attributes {stable_mosaic.version = 11 : i64} {
  func.func @_light_attention_kernel(%arg0: i32, %arg1: i32, %arg2: i32, %arg3: memref<1xf32, #tpu.memory_space<smem>>, %arg4: memref<1x8x128xf32, #tpu.memory_space<vmem>>, %arg5: memref<1x8x128xbf16, #tpu.memory_space<vmem>>, %arg6: memref<128x128xbf16, #tpu.memory_space<vmem>>, %arg7: memref<1x128xf32, #tpu.memory_space<vmem>>, %arg8: memref<1x8x128xf32, #tpu.memory_space<vmem>>, %arg9: memref<8x128xbf16, #tpu.memory_space<vmem>>, %arg10: memref<8x1xf32, #tpu.memory_space<vmem>>, %arg11: memref<8x1xf32, #tpu.memory_space<vmem>>, %arg12: memref<8x128xf32, #tpu.memory_space<vmem>>) attributes {dimension_semantics = [#tpu.dimension_semantics<parallel>, #tpu.dimension_semantics<parallel>, #tpu.dimension_semantics<arbitrary>], iteration_bounds = array<i64: 2, 1, 1>, scalar_prefetch = 0 : i64, scratch_operands = 4 : i64, tpu.core_type = #tpu.core_type<tc>, window_params = [{transform_indices = @transform_0, window_bounds = array<i64: 1>}, {transform_indices = @transform_1, window_bounds = array<i64: 1, 8, 128>}, {transform_indices = @transform_2, window_bounds = array<i64: 1, 8, 128>}, {pipeline_mode = #tpu.pipeline_mode<synchronous>, transform_indices = @transform_3, window_bounds = array<i64: 128, 128>}, {pipeline_mode = #tpu.pipeline_mode<synchronous>, transform_indices = @transform_4, window_bounds = array<i64: 1, 128>}, {transform_indices = @transform_5, window_bounds = array<i64: 1, 8, 128>}]} {
    %c0_i32 = arith.constant 0 : i32
    %0 = arith.cmpi eq, %arg2, %c0_i32 : i32
    %1 = arith.extui %0 : i1 to i32
    %c0_i32_0 = arith.constant 0 : i32
    %2 = arith.cmpi ne, %1, %c0_i32_0 : i32
    scf.if %2 {
      %c0_22 = arith.constant 0 : index
      %c0_23 = arith.constant 0 : index
      %c0_24 = arith.constant 0 : index
      %33 = vector.load %arg4[%c0_22, %c0_23, %c0_24] : memref<1x8x128xf32, #tpu.memory_space<vmem>>, vector<1x8x128xf32>
      %34 = vector.shape_cast %33 : vector<1x8x128xf32> to vector<8x128xf32>
      %35 = arith.truncf %34 : vector<8x128xf32> to vector<8x128xbf16>
      %c0_25 = arith.constant 0 : index
      %c0_26 = arith.constant 0 : index
      %36 = vector.load %arg6[%c0_25, %c0_26] : memref<128x128xbf16, #tpu.memory_space<vmem>>, vector<128x128xbf16>
      %cst_27 = arith.constant dense<0.000000e+00> : vector<8x128xf32>
      %37 = tpu.matmul %35, %36, %cst_27 {dimension_numbers = #tpu.dot_dimension_numbers<[1], [0], [0], [1], [0, 0, 1, 1], [], []>} : vector<8x128xbf16>, vector<128x128xbf16>, vector<8x128xf32> -> vector<8x128xf32>
      %c0_28 = arith.constant 0 : index
      %c0_29 = arith.constant 0 : index
      %38 = vector.load %arg7[%c0_28, %c0_29] : memref<1x128xf32, #tpu.memory_space<vmem>>, vector<1x128xf32>
      %39 = vector.broadcast %38 : vector<1x128xf32> to vector<8x128xf32>
      %40 = arith.addf %37, %39 : vector<8x128xf32>
      %41 = arith.truncf %40 : vector<8x128xf32> to vector<8x128xbf16>
      %c0_30 = arith.constant 0 : index
      %c0_31 = arith.constant 0 : index
      %42 = vector.load %arg9[%c0_30, %c0_31] : memref<8x128xbf16, #tpu.memory_space<vmem>>, vector<8x128xbf16>
      tpu.vector_store %arg9[%c0_30, %c0_31], %41 {strides = array<i32>} : memref<8x128xbf16, #tpu.memory_space<vmem>>, vector<8x128xbf16>,
      %cst_32 = arith.constant 0xFF800000 : f32
      %43 = vector.broadcast %cst_32 : f32 to vector<8x1xf32>
      %c0_33 = arith.constant 0 : index
      %c0_34 = arith.constant 0 : index
      %44 = vector.load %arg10[%c0_33, %c0_34] : memref<8x1xf32, #tpu.memory_space<vmem>>, vector<8x1xf32>
      tpu.vector_store %arg10[%c0_33, %c0_34], %43 {strides = array<i32>} : memref<8x1xf32, #tpu.memory_space<vmem>>, vector<8x1xf32>,
      %cst_35 = arith.constant 0.000000e+00 : f32
      %45 = vector.broadcast %cst_35 : f32 to vector<8x1xf32>
      %c0_36 = arith.constant 0 : index
      %c0_37 = arith.constant 0 : index
      %46 = vector.load %arg11[%c0_36, %c0_37] : memref<8x1xf32, #tpu.memory_space<vmem>>, vector<8x1xf32>
      tpu.vector_store %arg11[%c0_36, %c0_37], %45 {strides = array<i32>} : memref<8x1xf32, #tpu.memory_space<vmem>>, vector<8x1xf32>,
      %cst_38 = arith.constant 0.000000e+00 : f32
      %47 = vector.broadcast %cst_38 : f32 to vector<8x128xf32>
      %c0_39 = arith.constant 0 : index
      %c0_40 = arith.constant 0 : index
      %48 = vector.load %arg12[%c0_39, %c0_40] : memref<8x128xf32, #tpu.memory_space<vmem>>, vector<8x128xf32>
      tpu.vector_store %arg12[%c0_39, %c0_40], %47 {strides = array<i32>} : memref<8x128xf32, #tpu.memory_space<vmem>>, vector<8x128xf32>,
    } else {
    }
    %c0 = arith.constant 0 : index
    %c0_1 = arith.constant 0 : index
    %c0_2 = arith.constant 0 : index
    %3 = vector.load %arg5[%c0, %c0_1, %c0_2] : memref<1x8x128xbf16, #tpu.memory_space<vmem>>, vector<1x8x128xbf16>
    %4 = vector.shape_cast %3 : vector<1x8x128xbf16> to vector<8x128xbf16>
    %c0_3 = arith.constant 0 : index
    %c0_4 = arith.constant 0 : index
    %5 = vector.load %arg9[%c0_3, %c0_4] : memref<8x128xbf16, #tpu.memory_space<vmem>>, vector<8x128xbf16>
    %cst = arith.constant dense<0.000000e+00> : vector<8x8xf32>
    %6 = tpu.matmul %5, %4, %cst {dimension_numbers = #tpu.dot_dimension_numbers<[1], [1], [0], [0], [0, 0, 1, 0], [], []>} : vector<8x128xbf16>, vector<8x128xbf16>, vector<8x8xf32> -> vector<8x8xf32>
    %c0_5 = arith.constant 0 : index
    %c0_6 = arith.constant 0 : index
    %7 = vector.load %arg10[%c0_5, %c0_6] : memref<8x1xf32, #tpu.memory_space<vmem>>, vector<8x1xf32>
    %cst_7 = arith.constant dense<0xFF800000> : vector<8xf32>
    %8 = vector.multi_reduction <maximumf>, %6, %cst_7 [1] : vector<8x8xf32> to vector<8xf32>
    %9 = vector.shape_cast %8 : vector<8xf32> to vector<8x1xf32>
    %10 = arith.maximumf %7, %9 : vector<8x1xf32>
    %11 = arith.subf %7, %10 : vector<8x1xf32>
    %12 = math.exp %11 : vector<8x1xf32>
    %13 = vector.broadcast %10 : vector<8x1xf32> to vector<8x8xf32>
    %14 = arith.subf %6, %13 : vector<8x8xf32>
    %15 = math.exp %14 : vector<8x8xf32>
    %c0_8 = arith.constant 0 : index
    %c0_9 = arith.constant 0 : index
    %16 = vector.load %arg11[%c0_8, %c0_9] : memref<8x1xf32, #tpu.memory_space<vmem>>, vector<8x1xf32>
    %17 = arith.mulf %12, %16 : vector<8x1xf32>
    %cst_10 = arith.constant dense<0.000000e+00> : vector<8xf32>
    %18 = vector.multi_reduction <add>, %15, %cst_10 [1] : vector<8x8xf32> to vector<8xf32>
    %19 = vector.shape_cast %18 : vector<8xf32> to vector<8x1xf32>
    %20 = arith.addf %17, %19 : vector<8x1xf32>
    %c0_11 = arith.constant 0 : index
    %c0_12 = arith.constant 0 : index
    %21 = vector.load %arg11[%c0_11, %c0_12] : memref<8x1xf32, #tpu.memory_space<vmem>>, vector<8x1xf32>
    tpu.vector_store %arg11[%c0_11, %c0_12], %20 {strides = array<i32>} : memref<8x1xf32, #tpu.memory_space<vmem>>, vector<8x1xf32>,
    %c0_13 = arith.constant 0 : index
    %c0_14 = arith.constant 0 : index
    %22 = vector.load %arg12[%c0_13, %c0_14] : memref<8x128xf32, #tpu.memory_space<vmem>>, vector<8x128xf32>
    %23 = vector.broadcast %12 : vector<8x1xf32> to vector<8x128xf32>
    %24 = arith.mulf %23, %22 : vector<8x128xf32>
    %25 = arith.truncf %15 : vector<8x8xf32> to vector<8x8xbf16>
    %cst_15 = arith.constant dense<0.000000e+00> : vector<8x128xf32>
    %26 = tpu.matmul %25, %4, %cst_15 {dimension_numbers = #tpu.dot_dimension_numbers<[1], [0], [0], [1], [0, 0, 1, 1], [], []>} : vector<8x8xbf16>, vector<8x128xbf16>, vector<8x128xf32> -> vector<8x128xf32>
    %27 = arith.addf %24, %26 : vector<8x128xf32>
    %c0_16 = arith.constant 0 : index
    %c0_17 = arith.constant 0 : index
    %28 = vector.load %arg12[%c0_16, %c0_17] : memref<8x128xf32, #tpu.memory_space<vmem>>, vector<8x128xf32>
    tpu.vector_store %arg12[%c0_16, %c0_17], %27 {strides = array<i32>} : memref<8x128xf32, #tpu.memory_space<vmem>>, vector<8x128xf32>,
    %c0_18 = arith.constant 0 : index
    %c0_19 = arith.constant 0 : index
    %29 = vector.load %arg10[%c0_18, %c0_19] : memref<8x1xf32, #tpu.memory_space<vmem>>, vector<8x1xf32>
    tpu.vector_store %arg10[%c0_18, %c0_19], %10 {strides = array<i32>} : memref<8x1xf32, #tpu.memory_space<vmem>>, vector<8x1xf32>,
    %c0_i32_20 = arith.constant 0 : i32
    %30 = arith.cmpi eq, %arg2, %c0_i32_20 : i32
    %31 = arith.extui %30 : i1 to i32
    %c0_i32_21 = arith.constant 0 : i32
    %32 = arith.cmpi ne, %31, %c0_i32_21 : i32
    scf.if %32 {
      %c0_22 = arith.constant 0 : index
      %c0_23 = arith.constant 0 : index
      %33 = vector.load %arg11[%c0_22, %c0_23] : memref<8x1xf32, #tpu.memory_space<vmem>>, vector<8x1xf32>
      %34 = tpu.reciprocal %33 {approx = true} : vector<8x1xf32> -> vector<8x1xf32>
      %c0_24 = arith.constant 0 : index
      %35 = memref.load %arg3[%c0_24] : memref<1xf32, #tpu.memory_space<smem>>
      %c0_25 = arith.constant 0 : index
      %c0_26 = arith.constant 0 : index
      %c0_27 = arith.constant 0 : index
      %36 = vector.load %arg4[%c0_25, %c0_26, %c0_27] : memref<1x8x128xf32, #tpu.memory_space<vmem>>, vector<1x8x128xf32>
      %37 = vector.shape_cast %36 : vector<1x8x128xf32> to vector<8x128xf32>
      %c0_28 = arith.constant 0 : index
      %c0_29 = arith.constant 0 : index
      %38 = vector.load %arg12[%c0_28, %c0_29] : memref<8x128xf32, #tpu.memory_space<vmem>>, vector<8x128xf32>
      %39 = vector.broadcast %34 : vector<8x1xf32> to vector<8x128xf32>
      %40 = arith.mulf %38, %39 : vector<8x128xf32>
      %41 = vector.broadcast %35 : f32 to vector<8x128xf32>
      %42 = arith.mulf %41, %40 : vector<8x128xf32>
      %43 = arith.addf %37, %42 : vector<8x128xf32>
      %c0_30 = arith.constant 0 : index
      %c0_31 = arith.constant 0 : index
      %c0_32 = arith.constant 0 : index
      %44 = vector.load %arg8[%c0_30, %c0_31, %c0_32] : memref<1x8x128xf32, #tpu.memory_space<vmem>>, vector<1x8x128xf32>
      %45 = vector.shape_cast %44 : vector<1x8x128xf32> to vector<8x128xf32>
      %46 = vector.shape_cast %43 : vector<8x128xf32> to vector<1x8x128xf32>
      tpu.vector_store %arg8[%c0_30, %c0_31, %c0_32], %46 {strides = array<i32>} : memref<1x8x128xf32, #tpu.memory_space<vmem>>, vector<1x8x128xf32>,
    } else {
    }
    return
  }
  func.func @transform_0(%arg0: i32, %arg1: i32, %arg2: i32) -> i32 {
    %c0_i32 = arith.constant 0 : i32
    %c0_i32_0 = arith.constant 0 : i32
    return %c0_i32 : i32
  }
  func.func @transform_1(%arg0: i32, %arg1: i32, %arg2: i32) -> (i32, i32, i32) {
    %c0_i32 = arith.constant 0 : i32
    %c0_i32_0 = arith.constant 0 : i32
    return %arg0, %arg1, %c0_i32 : i32, i32, i32
  }
  func.func @transform_2(%arg0: i32, %arg1: i32, %arg2: i32) -> (i32, i32, i32) {
    %c0_i32 = arith.constant 0 : i32
    %c0_i32_0 = arith.constant 0 : i32
    return %arg0, %arg2, %c0_i32 : i32, i32, i32
  }
  func.func @transform_3(%arg0: i32, %arg1: i32, %arg2: i32) -> (i32, i32) {
    %c0_i32 = arith.constant 0 : i32
    %c0_i32_0 = arith.constant 0 : i32
    %c0_i32_1 = arith.constant 0 : i32
    return %c0_i32, %c0_i32_0 : i32, i32
  }
  func.func @transform_4(%arg0: i32, %arg1: i32, %arg2: i32) -> (i32, i32) {
    %c0_i32 = arith.constant 0 : i32
    %c0_i32_0 = arith.constant 0 : i32
    %c0_i32_1 = arith.constant 0 : i32
    return %c0_i32, %c0_i32_0 : i32, i32
  }
  func.func @transform_5(%arg0: i32, %arg1: i32, %arg2: i32) -> (i32, i32, i32) {
    %c0_i32 = arith.constant 0 : i32
    %c0_i32_0 = arith.constant 0 : i32
    return %arg0, %arg1, %c0_i32 : i32, i32, i32
  }
}

</mosaic_0001>

<llo_original>
// kernel: tpu_custom_call.1
$region0: #{tpu_custom_call.1}
  #allocation0 [shape = 'u32[]', space=smem, size = 0x4, offset = 0x4, fixed_abs, tag = 'smem constant byte address 0x4 - core index']
  #allocation1 [shape = 'u32[144,128]{1,0:T(1,128)}', space=vmem, size = 0x12000, scoped, tag = 'internal scratch']
  #allocation2 [shape = 'bf16[8,128]{1,0:T(8,128)(2,1)}', space=vmem, size = 0x800, scoped, tag = 'scratch operand']
  #allocation3 [shape = 'f32[8,1]{1,0:T(8,128)}', space=vmem, size = 0x1000, scoped, tag = 'scratch operand']
  #allocation4 [shape = 'f32[8,1]{1,0:T(8,128)}', space=vmem, size = 0x1000, scoped, tag = 'scratch operand']
  #allocation5 [shape = 'f32[8,128]{1,0:T(8,128)}', space=vmem, size = 0x1000, scoped, tag = 'scratch operand']
  #allocation6 [shape = 'f32[1]{0:T(128)S(6)}', space=smem, size = 0x200, scoped, tag = 'scoped memory for tpu_custom_call.1']
  %s0 = inlined_call_operand.<no memory space> [shape: f32[1], index: 0, kind: input, shape index: {}]
  %s1 = inlined_call_operand.hbm [shape: f32[2,8,128], index: 1, kind: input, shape index: {}]
  %s2 = inlined_call_operand.hbm [shape: bf16[2,8,128], index: 2, kind: input, shape index: {}]
  %s3 = inlined_call_operand.hbm [shape: bf16[128,128], index: 3, kind: input, shape index: {}]
  %s4 = inlined_call_operand.vmem [shape: f32[1,128], index: 4, kind: input, shape index: {}]
  %s5 = inlined_call_operand.hbm [shape: f32[2,8,128], index: 5, kind: output, shape index: {}]
  %s6 = sld [smem:[#allocation0]]
  $region73: #{tpu_custom_call.1} parent=0
    _
  %s8 = ssub.s32 1, %s6
  %s9 = scalar_select 0, %s8, %s6
  %10 = sst [smem:[#allocation6]] %s0
  $region1: #{tpu_custom_call.1} parent=0
    #allocation7 [shape = 'u8[8192]{0}', space=vmem, size = 0x2000, scoped, tag = 'input window, operand 1']
    #allocation8 [shape = 's32[2]{0}', space=sflag, size = 0x8, scoped, tag = 'scoped memory for tpu_custom_call.1']
    #allocation9 [shape = 's32[2]{0}', space=sflag, size = 0x8, scoped, tag = 'scoped memory for tpu_custom_call.1']
    #allocation10 [shape = 'u8[4096]{0}', space=vmem, size = 0x1000, scoped, tag = 'input window, operand 2']
    #allocation11 [shape = 's32[2]{0}', space=sflag, size = 0x8, scoped, tag = 'scoped memory for tpu_custom_call.1']
    #allocation12 [shape = 'u8[32768]{0}', space=vmem, size = 0x8000, scoped, tag = 'input window, operand 3, single buffered']
    #allocation13 [shape = 'u8[8192]{0}', space=vmem, size = 0x2000, scoped, tag = 'output window, operand 0']
    %11 = vsyncpa [#allocation8], 0
    %s12 = scalar_lea.sflag [#allocation8], 1
    %13 = vsyncpa %s12, 0
    %14 = vsyncpa [#allocation11], 0
    %s15 = scalar_lea.sflag [#allocation11], 1
    %16 = vsyncpa %s15, 0
    %17 = vsyncpa [#allocation9], 0
    %s18 = scalar_lea.sflag [#allocation9], 1
    %19 = vsyncpa %s18, 0
    loop: start=0, step=1, limit=4
    $region2: #{tpu_custom_call.1} parent=1 // loop_pre_header
      _
    $region3: #{tpu_custom_call.1} parent=1 // loop_header
      %s21 = sphi 0, %s25
      %p22 = scmp.ge.s32.totalorder %s21, 4
      %s28 = sphi 0, %s47
      %s29 = sphi 0, %s43
      %s30 = sphi 0, %s39
      %s31 = sphi 0, %s28
      %s32 = sphi 0, %s29
      %s33 = sphi 0, %s30
      %s34 = sphi 0, %s31
      %s35 = sphi 0, %s32
      %s36 = sphi 0, %s33
      %s48 = sphi 0, %s48
      %s50 = sphi 0, %s48
      %s51 = sphi 0, %s50
      %s65 = sphi 0, %s51
      %s73 = sphi 0, %s75
      %s76 = sphi 0, %s73
      %s77 = sphi 0, %s76
      %s93 = sphi 0, %s77
      %s101 = sphi 0, %s103
      %s104 = sphi 0, %s101
      %s105 = sphi 0, %s104
      %s121 = sphi 0, %s105
      %s125 = sphi 0, %s125
      %s127 = sphi 0, %s125
      %s128 = sphi 0, %s127
      %s142 = sphi 0, %s128
      %s146 = sphi 0, %s146
      %s148 = sphi 0, %s146
      %s149 = sphi 0, %s148
      %s163 = sphi 0, %s149
      %s171 = sphi 0, %s173
      %s174 = sphi 0, %s171
      %s175 = sphi 0, %s174
      %s191 = sphi 0, %s175
    $region4: #{tpu_custom_call.1} parent=1 // loop_header_branch
      %24 = sbr.rel (%p22) target = $region8
    $region5: #{tpu_custom_call.1} parent=1 // loop_body
      %s26 = ssub.s32 %s21, 1
      %s27 = ssub.s32 %s21, 2
      %s37 = sadd.s32 1, %s30
      %p38 = scmp.ge.s32.totalorder %s37, 1
      %s39 = scalar_select %p38, 0, %s37
      %s40 = sadd.s32 1, %s29
      %s41 = scalar_select %p38, %s40, %s29
      %p42 = scmp.ge.s32.totalorder %s41, 1
      %s43 = scalar_select %p42, 0, %s41
      %s44 = sadd.s32 1, %s28
      %s45 = scalar_select %p42, %s44, %s28
      %p46 = scmp.ge.s32.totalorder %s45, 2
      %s47 = scalar_select %p46, 0, %s45
      %s49 = sadd.s32 %s48, 1
      %p52 = scmp.eq.s32.totalorder %s21, 1
      %p53 = scmp.ne.s32.totalorder %s48, %s50
      %p54 = scmp.eq.s32.totalorder %s21, 0
      %p55 = por %p53, %p54
      %p56 = scmp.ne.s32.totalorder %s48, %s50
      %p57 = scmp.eq.s32.totalorder %s26, 1
      %p58 = por %p56, %p57
      %p59 = scmp.ne.s32.totalorder %s50, %s51
      %p60 = scmp.eq.s32.totalorder %s26, 0
      %p61 = por %p59, %p60
      %p62 = scmp.ne.s32.totalorder %s50, %s51
      %p63 = scmp.eq.s32.totalorder %s27, 1
      %p64 = por %p62, %p63
      %p66 = scmp.ne.s32.totalorder %s51, %s65
      %p67 = scmp.eq.s32.totalorder %s27, 0
      %p68 = por %p66, %p67
      %s69 = ssub.s32 %s28, %s47
      %s70 = ssub.s32 %s29, %s43
      %s71 = sor.u32 %s69, %s70
      %p72 = scmp.eq.s32.totalorder %s71, 0
      %s74 = sadd.s32 %s73, 1
      %s75 = scalar_select %p72, %s73, %s74
      %p78 = pneg %p72
      %p79 = scmp.eq.s32.totalorder %s21, 1
      %p80 = por %p78, %p79
      %p81 = scmp.ne.s32.totalorder %s73, %s76
      %p82 = scmp.eq.s32.totalorder %s21, 0
      %p83 = por %p81, %p82
      %p84 = scmp.ne.s32.totalorder %s73, %s76
      %p85 = scmp.eq.s32.totalorder %s26, 1
      %p86 = por %p84, %p85
      %p87 = scmp.ne.s32.totalorder %s76, %s77
      %p88 = scmp.eq.s32.totalorder %s26, 0
      %p89 = por %p87, %p88
      %p90 = scmp.ne.s32.totalorder %s76, %s77
      %p91 = scmp.eq.s32.totalorder %s27, 1
      %p92 = por %p90, %p91
      %p94 = scmp.ne.s32.totalorder %s77, %s93
      %p95 = scmp.eq.s32.totalorder %s27, 0
      %p96 = por %p94, %p95
      %s97 = ssub.s32 %s28, %s47
      %s98 = ssub.s32 %s30, %s39
      %s99 = sor.u32 %s97, %s98
      %p100 = scmp.eq.s32.totalorder %s99, 0
      %s102 = sadd.s32 %s101, 1
      %s103 = scalar_select %p100, %s101, %s102
      %p106 = pneg %p100
      %p107 = scmp.eq.s32.totalorder %s21, 1
      %p108 = por %p106, %p107
      %p109 = scmp.ne.s32.totalorder %s101, %s104
      %p110 = scmp.eq.s32.totalorder %s21, 0
      %p111 = por %p109, %p110
      %p112 = scmp.ne.s32.totalorder %s101, %s104
      %p113 = scmp.eq.s32.totalorder %s26, 1
      %p114 = por %p112, %p113
      %p115 = scmp.ne.s32.totalorder %s104, %s105
      %p116 = scmp.eq.s32.totalorder %s26, 0
      %p117 = por %p115, %p116
      %p118 = scmp.ne.s32.totalorder %s104, %s105
      %p119 = scmp.eq.s32.totalorder %s27, 1
      %p120 = por %p118, %p119
      %p122 = scmp.ne.s32.totalorder %s105, %s121
      %p123 = scmp.eq.s32.totalorder %s27, 0
      %p124 = por %p122, %p123
      %s126 = sadd.s32 %s125, 1
      %p129 = scmp.eq.s32.totalorder %s21, 1
      %p130 = scmp.ne.s32.totalorder %s125, %s127
      %p131 = scmp.eq.s32.totalorder %s21, 0
      %p132 = por %p130, %p131
      %p133 = scmp.ne.s32.totalorder %s125, %s127
      %p134 = scmp.eq.s32.totalorder %s26, 1
      %p135 = por %p133, %p134
      %p136 = scmp.ne.s32.totalorder %s127, %s128
      %p137 = scmp.eq.s32.totalorder %s26, 0
      %p138 = por %p136, %p137
      %p139 = scmp.ne.s32.totalorder %s127, %s128
      %p140 = scmp.eq.s32.totalorder %s27, 1
      %p141 = por %p139, %p140
      %p143 = scmp.ne.s32.totalorder %s128, %s142
      %p144 = scmp.eq.s32.totalorder %s27, 0
      %p145 = por %p143, %p144
      %s147 = sadd.s32 %s146, 1
      %p150 = scmp.eq.s32.totalorder %s21, 1
      %p151 = scmp.ne.s32.totalorder %s146, %s148
      %p152 = scmp.eq.s32.totalorder %s21, 0
      %p153 = por %p151, %p152
      %p154 = scmp.ne.s32.totalorder %s146, %s148
      %p155 = scmp.eq.s32.totalorder %s26, 1
      %p156 = por %p154, %p155
      %p157 = scmp.ne.s32.totalorder %s148, %s149
      %p158 = scmp.eq.s32.totalorder %s26, 0
      %p159 = por %p157, %p158
      %p160 = scmp.ne.s32.totalorder %s148, %s149
      %p161 = scmp.eq.s32.totalorder %s27, 1
      %p162 = por %p160, %p161
      %p164 = scmp.ne.s32.totalorder %s149, %s163
      %p165 = scmp.eq.s32.totalorder %s27, 0
      %p166 = por %p164, %p165
      %s167 = ssub.s32 %s28, %s47
      %s168 = ssub.s32 %s29, %s43
      %s169 = sor.u32 %s167, %s168
      %p170 = scmp.eq.s32.totalorder %s169, 0
      %s172 = sadd.s32 %s171, 1
      %s173 = scalar_select %p170, %s171, %s172
      %p176 = pneg %p170
      %p177 = scmp.eq.s32.totalorder %s21, 1
      %p178 = por %p176, %p177
      %p179 = scmp.ne.s32.totalorder %s171, %s174
      %p180 = scmp.eq.s32.totalorder %s21, 0
      %p181 = por %p179, %p180
      %p182 = scmp.ne.s32.totalorder %s171, %s174
      %p183 = scmp.eq.s32.totalorder %s26, 1
      %p184 = por %p182, %p183
      %p185 = scmp.ne.s32.totalorder %s174, %s175
      %p186 = scmp.eq.s32.totalorder %s26, 0
      %p187 = por %p185, %p186
      %p188 = scmp.ne.s32.totalorder %s174, %s175
      %p189 = scmp.eq.s32.totalorder %s27, 1
      %p190 = por %p188, %p189
      %p192 = scmp.ne.s32.totalorder %s175, %s191
      %p193 = scmp.eq.s32.totalorder %s27, 0
      %p194 = por %p192, %p193
      %p195 = scmp.le.s32.totalorder 1, %s21
      %p196 = scmp.lt.s32.totalorder %s21, 3
      %p197 = pnand %p195, %p196
      %p198 = pneg %p197
      // Predicated region
      $region9: #{tpu_custom_call.1} parent=5 // pred_check
        _
      $region10: #{tpu_custom_call.1} parent=5 // pred_check_branch
        %200 = sbr.rel (%p197) target = $region12
      $region11: #{tpu_custom_call.1} parent=5 // pred_region
        %s201 = ssub.s32 %s21, 1
        // Predicated region
        $region13: #{tpu_custom_call.1} parent=11 // pred_check
          %p202 = pneg %p61
        $region14: #{tpu_custom_call.1} parent=11 // pred_check_branch
          %204 = sbr.rel (%p202) target = $region16
        $region15: #{tpu_custom_call.1} parent=11 // pred_region
          _
        $region16: #{tpu_custom_call.1} parent=11 // pred_fallthru
          _
        // Predicated region
        $region17: #{tpu_custom_call.1} parent=11 // pred_check
          %p205 = pneg %p138
        $region18: #{tpu_custom_call.1} parent=11 // pred_check_branch
          %207 = sbr.rel (%p205) target = $region20
        $region19: #{tpu_custom_call.1} parent=11 // pred_region
          %s209 = ssub.s32 1024, 1024
          %210 = vsyncadd [#allocation11], %s209
          %s211 = sshll.u32 [#allocation12], 4
          %s212 = int_to_ptr.vmem [resolvable:$true] %s211
          %217 = dma.hbm_to_vmem [thread:$0]  %s3, 1024, %s212, [#allocation11], 64, 64, 4
        $region20: #{tpu_custom_call.1} parent=11 // pred_fallthru
          _
        // Predicated region
        $region21: #{tpu_custom_call.1} parent=11 // pred_check
          %p218 = pneg %p159
        $region22: #{tpu_custom_call.1} parent=11 // pred_check_branch
          %220 = sbr.rel (%p218) target = $region24
        $region23: #{tpu_custom_call.1} parent=11 // pred_region
          _
        $region24: #{tpu_custom_call.1} parent=11 // pred_fallthru
          _
      $region12: #{tpu_custom_call.1} parent=5 // pred_fallthru
        _
      %p221 = scmp.lt.s32.totalorder %s21, 2
      // Predicated region
      $region25: #{tpu_custom_call.1} parent=5 // pred_check
        %p222 = pneg %p221
      $region26: #{tpu_custom_call.1} parent=5 // pred_check_branch
        %224 = sbr.rel (%p222) target = $region28
      $region27: #{tpu_custom_call.1} parent=5 // pred_region
        // Predicated region
        $region29: #{tpu_custom_call.1} parent=27 // pred_check
          %p225 = pneg %p83
        $region30: #{tpu_custom_call.1} parent=27 // pred_check_branch
          %227 = sbr.rel (%p225) target = $region32
        $region31: #{tpu_custom_call.1} parent=27 // pred_region
          %s228 = sand.u32 %s73, 1
          %s229 = scalar_lea.sflag [#allocation8], %s228
          %s230 = sand.u32 %s73, 1
          %s231 = smul.addr %s230, 8
          %s232 = scalar_lea.vmem [#allocation7], %s231
          %s234 = ssub.s32 128, 128
          %235 = vsyncadd %s229, %s234
          %s236 = sadd.s32 %s29, %s28
          %s237 = smul.addr %s236, 128
          %s238 = scalar_lea.hbm %s1, %s237
          %s240 = sshll.u32 %s232, 4
          %s241 = int_to_ptr.vmem [resolvable:$true] %s240
          %243 = dma.hbm_to_vmem [thread:$0]  %s238, 128, %s241, %s229
        $region32: #{tpu_custom_call.1} parent=27 // pred_fallthru
          _
        // Predicated region
        $region33: #{tpu_custom_call.1} parent=27 // pred_check
          %p244 = pneg %p111
        $region34: #{tpu_custom_call.1} parent=27 // pred_check_branch
          %246 = sbr.rel (%p244) target = $region36
        $region35: #{tpu_custom_call.1} parent=27 // pred_region
          %s247 = sand.u32 %s21, 1
          %s248 = scalar_lea.sflag [#allocation11], %s247
          %s249 = sand.u32 %s101, 1
          %s250 = smul.addr %s249, 4
          %s251 = scalar_lea.vmem [#allocation10], %s250
          %s253 = ssub.s32 64, 64
          %254 = vsyncadd %s248, %s253
          %s255 = sadd.s32 %s30, %s28
          %s256 = smul.addr %s255, 64
          %s257 = scalar_lea.hbm %s2, %s256
          %s259 = sshll.u32 %s251, 4
          %s260 = int_to_ptr.vmem [resolvable:$true] %s259
          %262 = dma.hbm_to_vmem [thread:$0]  %s257, 64, %s260, %s248
        $region36: #{tpu_custom_call.1} parent=27 // pred_fallthru
          _
      $region28: #{tpu_custom_call.1} parent=5 // pred_fallthru
        _
      %p263 = scmp.le.s32.totalorder 1, %s21
      %p264 = scmp.lt.s32.totalorder %s21, 3
      %p265 = pnand %p263, %p264
      %p266 = pneg %p265
      // Predicated region
      $region37: #{tpu_custom_call.1} parent=5 // pred_check
        _
      $region38: #{tpu_custom_call.1} parent=5 // pred_check_branch
        %268 = sbr.rel (%p265) target = $region40
      $region39: #{tpu_custom_call.1} parent=5 // pred_region
        %s269 = ssub.s32 %s21, 1
        %s270 = sand.u32 %s76, 1
        %s271 = scalar_lea.sflag [#allocation8], %s270
        %s272 = sand.u32 %s76, 1
        %s273 = smul.addr %s272, 8
        %s274 = scalar_lea.vmem [#allocation7], %s273
        // Predicated region
        $region41: #{tpu_custom_call.1} parent=39 // pred_check
          %p275 = pneg %p89
        $region42: #{tpu_custom_call.1} parent=39 // pred_check_branch
          %277 = sbr.rel (%p275) target = $region44
        $region43: #{tpu_custom_call.1} parent=39 // pred_region
          %278 = dma.done %s271, 128
        $region44: #{tpu_custom_call.1} parent=39 // pred_fallthru
          _
        %s279 = sand.u32 %s26, 1
        %s280 = scalar_lea.sflag [#allocation11], %s279
        %s281 = sand.u32 %s104, 1
        %s282 = smul.addr %s281, 4
        %s283 = scalar_lea.vmem [#allocation10], %s282
        // Predicated region
        $region45: #{tpu_custom_call.1} parent=39 // pred_check
          %p284 = pneg %p117
        $region46: #{tpu_custom_call.1} parent=39 // pred_check_branch
          %286 = sbr.rel (%p284) target = $region48
        $region47: #{tpu_custom_call.1} parent=39 // pred_region
          %287 = dma.done %s280, 64
        $region48: #{tpu_custom_call.1} parent=39 // pred_fallthru
          _
        // Predicated region
        $region49: #{tpu_custom_call.1} parent=39 // pred_check
          %p288 = pneg %p138
        $region50: #{tpu_custom_call.1} parent=39 // pred_check_branch
          %290 = sbr.rel (%p288) target = $region52
        $region51: #{tpu_custom_call.1} parent=39 // pred_region
          %291 = dma.done [#allocation11], 1024
        $region52: #{tpu_custom_call.1} parent=39 // pred_fallthru
          _
        %p292 = pneg %p61
        %p293 = pneg %p58
        %s294 = sand.u32 %s76, 1
        %s295 = scalar_lea.sflag [#allocation8], %s294
        %s296 = sand.u32 %s76, 1
        %s297 = smul.addr %s296, 8
        %s298 = scalar_lea.vmem [#allocation7], %s297
        %p299 = pneg %p89
        %p300 = pneg %p86
        %s301 = sand.u32 %s26, 1
        %s302 = scalar_lea.sflag [#allocation11], %s301
        %s303 = sand.u32 %s104, 1
        %s304 = smul.addr %s303, 4
        %s305 = scalar_lea.vmem [#allocation10], %s304
        %p306 = pneg %p117
        %p307 = pneg %p114
        %p308 = pneg %p138
        %p309 = pneg %p135
        %p310 = pneg %p159
        %p311 = pneg %p156
        %p312 = pneg %p187
        %p313 = pneg %p184
        %s314 = sand.u32 %s174, 1
        %s315 = scalar_lea.sflag [#allocation9], %s314
        %s316 = sand.u32 %s174, 1
        %s317 = smul.addr %s316, 8
        %s318 = scalar_lea.vmem [#allocation13], %s317
        %p320 = scmp.eq.s32.totalorder %s33, 0
        // Predicated region
        $region53: #{tpu_custom_call.1} parent=39 // pred_check
          %p321 = pneg %p320
        $region54: #{tpu_custom_call.1} parent=39 // pred_check_branch
          %323 = sbr.rel (%p321) target = $region56
        $region55: #{tpu_custom_call.1} parent=39 // pred_region
          %v324 = vld [vmem:[%s274] sm:$0xff]
          %v325 = vpack.c.bf16 %v324, %v324
          %v326 = vld [vmem:[#allocation12] sm:$0xf]
          %v327 = vld [vmem:[#allocation12 + $0x4] sm:$0xf]
          %v328 = vld [vmem:[#allocation12 + $0x8] sm:$0xf]
          %v329 = vld [vmem:[#allocation12 + $0xc] sm:$0xf]
          %v330 = vld [vmem:[#allocation12 + $0x10] sm:$0xf]
          %v331 = vld [vmem:[#allocation12 + $0x14] sm:$0xf]
          %v332 = vld [vmem:[#allocation12 + $0x18] sm:$0xf]
          %v333 = vld [vmem:[#allocation12 + $0x1c] sm:$0xf]
          %v334 = vld [vmem:[#allocation12 + $0x20] sm:$0xf]
          %v335 = vld [vmem:[#allocation12 + $0x24] sm:$0xf]
          %v336 = vld [vmem:[#allocation12 + $0x28] sm:$0xf]
          %v337 = vld [vmem:[#allocation12 + $0x2c] sm:$0xf]
          %v338 = vld [vmem:[#allocation12 + $0x30] sm:$0xf]
          %v339 = vld [vmem:[#allocation12 + $0x34] sm:$0xf]
          %v340 = vld [vmem:[#allocation12 + $0x38] sm:$0xf]
          %v341 = vld [vmem:[#allocation12 + $0x3c] sm:$0xf]
          %v342 = vld [vmem:[%s4] sm:$0x1]
          %v344 = vlaneseq
          %v345 = vshrl.u32 %v344, 7
          %v346 = vsub.s32 0, %v345
          %v347 = vrot.slane %v342, %v346
          %v365 = vunpack.c.l.b16 %v326
          %v366 = vunpack.c.l.b16 %v327
          %v367 = vunpack.c.l.b16 %v328
          %v368 = vunpack.c.l.b16 %v329
          %v369 = vunpack.c.l.b16 %v330
          %v370 = vunpack.c.l.b16 %v331
          %v371 = vunpack.c.l.b16 %v332
          %v372 = vunpack.c.l.b16 %v333
          %v373 = vunpack.c.l.b16 %v334
          %v374 = vunpack.c.l.b16 %v335
          %v375 = vunpack.c.l.b16 %v336
          %v376 = vunpack.c.l.b16 %v337
          %v377 = vunpack.c.l.b16 %v338
          %v378 = vunpack.c.l.b16 %v339
          %v379 = vunpack.c.l.b16 %v340
          %v380 = vunpack.c.l.b16 %v341
          %v381 = vpack.c.b16 %v366, %v365
          %v382 = vpack.c.b16 %v368, %v367
          %v383 = vpack.c.b16 %v370, %v369
          %v384 = vpack.c.b16 %v372, %v371
          %v385 = vpack.c.b16 %v374, %v373
          %v386 = vpack.c.b16 %v376, %v375
          %v387 = vpack.c.b16 %v378, %v377
          %v388 = vpack.c.b16 %v380, %v379
          %397 = vmatprep.subr.bf16.mxu0 0
          %398 = vmatpush1.bf16.msra.mxu0 %v381
          %399 = vmatprep.subr.bf16.mxu0 0
          %400 = vmatpush1.bf16.msra.mxu0 %v382
          %401 = vmatprep.subr.bf16.mxu0 0
          %402 = vmatpush1.bf16.msra.mxu0 %v383
          %403 = vmatprep.subr.bf16.mxu0 0
          %404 = vmatpush1.bf16.msra.mxu0 %v384
          %405 = vmatprep.subr.bf16.mxu0 0
          %406 = vmatpush1.bf16.msra.mxu0 %v385
          %407 = vmatprep.subr.bf16.mxu0 0
          %408 = vmatpush1.bf16.msra.mxu0 %v386
          %409 = vmatprep.subr.bf16.mxu0 0
          %410 = vmatpush1.bf16.msra.mxu0 %v387
          %411 = vmatprep.subr.bf16.mxu0 0
          %412 = vmatpush1.bf16.msra.mxu0 %v388
          %413 = vmatprep.subr.bf16.mxu0 0
          %414 = vmatpush1.bf16.msra.mxu0 0
          %415 = vmatprep.subr.bf16.mxu0 0
          %416 = vmatpush1.bf16.msra.mxu0 0
          %417 = vmatprep.subr.bf16.mxu0 0
          %418 = vmatpush1.bf16.msra.mxu0 0
          %419 = vmatprep.subr.bf16.mxu0 0
          %420 = vmatpush1.bf16.msra.mxu0 0
          %421 = vmatprep.subr.bf16.mxu0 0
          %422 = vmatpush1.bf16.msra.mxu0 0
          %423 = vmatprep.subr.bf16.mxu0 0
          %424 = vmatpush1.bf16.msra.mxu0 0
          %425 = vmatprep.subr.bf16.mxu0 0
          %426 = vmatpush1.bf16.msra.mxu0 0
          %427 = vmatprep.subr.bf16.mxu0 0
          %428 = vmatpush1.bf16.msra.mxu0 0
          %429 = vmatprep.mubr.bf16.mxu0 0
          %430 = vmatmul.mubr.bf16.gmra.mrb[0].mxu0 %v325
          %v431 = vpop.f32.mrb[0].mxu0
          %v432 = vadd.f32 %v347, %v431
          %v433 = vpop.f32.mrb[0].mxu0
          %v434 = vpop.f32.mrb[0].mxu0
          %v435 = vpop.f32.mrb[0].mxu0
          %436 = vdwg.mxu0
          %v437 = vpack.c.bf16 %v432, %v432
          %438 = vst [vmem:[#allocation2] sm:$0xf] %v437
          %vm439 = vcmask 7168
          %440 = vst.msk [vmem:[#allocation3] sm:$0xff] %vm439, -inf
          %441 = vst.msk [vmem:[#allocation4] sm:$0xff] %vm439, 0.0
          %442 = vst [vmem:[#allocation5] sm:$0xff] 0.0
        $region56: #{tpu_custom_call.1} parent=39 // pred_fallthru
          _
        %v443 = vld [vmem:[%s283] sm:$0xf]
        %v444 = vld [vmem:[#allocation2] sm:$0xf]
        %445 = vmatprep.subr.bf16.mxu0 0
        %446 = vmatpush1.bf16.xpose.msra.mxu0 %v443
        %447 = vmatprep.subr.bf16.mxu0 0
        %448 = vmatpush1.bf16.xpose.msra.mxu0 0
        %449 = vmatprep.subr.bf16.mxu0 0
        %450 = vmatpush1.bf16.xpose.msra.mxu0 0
        %451 = vmatprep.subr.bf16.mxu0 0
        %452 = vmatpush1.bf16.xpose.msra.mxu0 0
        %453 = vmatprep.subr.bf16.mxu0 0
        %454 = vmatpush1.bf16.xpose.msra.mxu0 0
        %455 = vmatprep.subr.bf16.mxu0 0
        %456 = vmatpush1.bf16.xpose.msra.mxu0 0
        %457 = vmatprep.subr.bf16.mxu0 0
        %458 = vmatpush1.bf16.xpose.msra.mxu0 0
        %459 = vmatprep.subr.bf16.mxu0 0
        %460 = vmatpush1.bf16.xpose.msra.mxu0 0
        %461 = vmatprep.subr.bf16.mxu0 0
        %462 = vmatpush1.bf16.xpose.msra.mxu0 0
        %463 = vmatprep.subr.bf16.mxu0 0
        %464 = vmatpush1.bf16.xpose.msra.mxu0 0
        %465 = vmatprep.subr.bf16.mxu0 0
        %466 = vmatpush1.bf16.xpose.msra.mxu0 0
        %467 = vmatprep.subr.bf16.mxu0 0
        %468 = vmatpush1.bf16.xpose.msra.mxu0 0
        %469 = vmatprep.subr.bf16.mxu0 0
        %470 = vmatpush1.bf16.xpose.msra.mxu0 0
        %471 = vmatprep.subr.bf16.mxu0 0
        %472 = vmatpush1.bf16.xpose.msra.mxu0 0
        %473 = vmatprep.subr.bf16.mxu0 0
        %474 = vmatpush1.bf16.xpose.msra.mxu0 0
        %475 = vmatprep.subr.bf16.mxu0 0
        %476 = vmatpush1.bf16.xpose.msra.mxu0 0
        %477 = vmatprep.mubr.bf16.mxu0 0
        %478 = vmatmul.mubr.bf16.gmra.mrb[0].mxu0 %v444
        %v479 = vpop.f32.mrb[0].mxu0
        %v480 = vadd.f32 0.0, %v479
        %v481 = vpop.f32.mrb[0].mxu0
        %v482 = vpop.f32.mrb[0].mxu0
        %v483 = vpop.f32.mrb[0].mxu0
        %484 = vdwg.mxu0
        %v485 = vld [vmem:[#allocation3] sm:$0xff]
        %vm486 = vcmask 64512
        %v487 = vsel %vm486, %v480, -inf
        %488 = vmax.xlane.f32.xlu0 %v487
        %v489 = vpop.xlane.xlu0 %488
        %v490 = vmax.f32 %v485, %v489
        %v491 = vsub.f32 %v485, %v490
        %v492 = vmul.f32 %v491, 1.442695
        %v493 = vpow.pop %v492
        %495 = vset.pattern.permute.xlu0 0
        %496 = vperm.xlu0 %495, %v490
        %v497 = vpop.permute.xlu0 %496
        %v499 = vsub.f32 %v480, %v497
        %v500 = vmul.f32 %v499, 1.442695
        %v501 = vpow.pop %v500
        %v502 = vld [vmem:[#allocation4] sm:$0xff]
        %v503 = vmul.f32 %v493, %v502
        %v504 = vsel %vm486, %v501, 0.0
        %505 = vadd.xlane.f32.xlu0 %v504
        %v506 = vpop.xlane.xlu0 %505
        %v507 = vadd.f32 %v503, %v506
        %vm508 = vcmask 7168
        %509 = vst.msk [vmem:[#allocation4] sm:$0xff] %vm508, %v507
        %v510 = vld [vmem:[#allocation5] sm:$0xff]
        %512 = vset.pattern.permute.xlu0 0
        %513 = vperm.xlu0 %512, %v493
        %v514 = vpop.permute.xlu0 %513
        %v516 = vmul.f32 %v514, %v510
        %v517 = vpack.c.bf16 %v501, %v501
        %v519 = vsel %vm486, %v517, 0
        %vm521 = vcmask 1043456
        %v523 = vsel %vm521, %v443, 0
        %525 = vmatprep.subr.bf16.mxu0 0
        %526 = vmatpush1.bf16.msra.mxu0 %v523
        %527 = vmatprep.subr.bf16.mxu0 0
        %528 = vmatpush1.bf16.msra.mxu0 0
        %529 = vmatprep.subr.bf16.mxu0 0
        %530 = vmatpush1.bf16.msra.mxu0 0
        %531 = vmatprep.subr.bf16.mxu0 0
        %532 = vmatpush1.bf16.msra.mxu0 0
        %533 = vmatprep.subr.bf16.mxu0 0
        %534 = vmatpush1.bf16.msra.mxu0 0
        %535 = vmatprep.subr.bf16.mxu0 0
        %536 = vmatpush1.bf16.msra.mxu0 0
        %537 = vmatprep.subr.bf16.mxu0 0
        %538 = vmatpush1.bf16.msra.mxu0 0
        %539 = vmatprep.subr.bf16.mxu0 0
        %540 = vmatpush1.bf16.msra.mxu0 0
        %541 = vmatprep.subr.bf16.mxu0 0
        %542 = vmatpush1.bf16.msra.mxu0 0
        %543 = vmatprep.subr.bf16.mxu0 0
        %544 = vmatpush1.bf16.msra.mxu0 0
        %545 = vmatprep.subr.bf16.mxu0 0
        %546 = vmatpush1.bf16.msra.mxu0 0
        %547 = vmatprep.subr.bf16.mxu0 0
        %548 = vmatpush1.bf16.msra.mxu0 0
        %549 = vmatprep.subr.bf16.mxu0 0
        %550 = vmatpush1.bf16.msra.mxu0 0
        %551 = vmatprep.subr.bf16.mxu0 0
        %552 = vmatpush1.bf16.msra.mxu0 0
        %553 = vmatprep.subr.bf16.mxu0 0
        %554 = vmatpush1.bf16.msra.mxu0 0
        %555 = vmatprep.subr.bf16.mxu0 0
        %556 = vmatpush1.bf16.msra.mxu0 0
        %557 = vmatprep.mubr.bf16.mxu0 0
        %558 = vmatmul.mubr.bf16.gmra.mrb[0].mxu0 %v519
        %v559 = vpop.f32.mrb[0].mxu0
        %v560 = vadd.f32 0.0, %v559
        %v561 = vpop.f32.mrb[0].mxu0
        %v562 = vpop.f32.mrb[0].mxu0
        %v563 = vpop.f32.mrb[0].mxu0
        %564 = vdwg.mxu0
        %v565 = vadd.f32 %v516, %v560
        %566 = vst [vmem:[#allocation5] sm:$0xff] %v565
        %567 = vst.msk [vmem:[#allocation3] sm:$0xff] %vm508, %v490
        // Predicated region
        $region57: #{tpu_custom_call.1} parent=39 // pred_check
          %p568 = pneg %p320
        $region58: #{tpu_custom_call.1} parent=39 // pred_check_branch
          %570 = sbr.rel (%p568) target = $region60
        $region59: #{tpu_custom_call.1} parent=39 // pred_region
          %v571 = vld [vmem:[#allocation4] sm:$0xff]
          %v572 = vrcp.pop %v571
          %s573 = sld [smem:[#allocation6]]
          %v574 = vld [vmem:[%s274] sm:$0xff]
          %v575 = vld [vmem:[#allocation5] sm:$0xff]
          %577 = vset.pattern.permute.xlu0 0
          %578 = vperm.xlu0 %577, %v572
          %v579 = vpop.permute.xlu0 %578
          %v581 = vmul.f32 %v575, %v579
          %v582 = vstv %s573
          %v583 = vmul.f32 %v582, %v581
          %v584 = vadd.f32 %v574, %v583
          %585 = vst [vmem:[%s318] sm:$0xff] %v584
        $region60: #{tpu_custom_call.1} parent=39 // pred_fallthru
          _
        %s586 = sand.u32 %s174, 1
        %s587 = scalar_lea.sflag [#allocation9], %s586
        %s588 = sand.u32 %s174, 1
        %s589 = smul.addr %s588, 8
        %s590 = scalar_lea.vmem [#allocation13], %s589
        // Predicated region
        $region61: #{tpu_custom_call.1} parent=39 // pred_check
          %p591 = pneg %p184
        $region62: #{tpu_custom_call.1} parent=39 // pred_check_branch
          %593 = sbr.rel (%p591) target = $region64
        $region63: #{tpu_custom_call.1} parent=39 // pred_region
          %s595 = ssub.s32 128, 128
          %596 = vsyncadd %s587, %s595
          %s597 = sadd.s32 %s32, %s31
          %s598 = smul.addr %s597, 128
          %s599 = scalar_lea.hbm %s5, %s598
          %s601 = sshll.u32 %s590, 4
          %s602 = int_to_ptr.vmem [resolvable:$true] %s601
          %604 = dma.vmem_to_hbm [thread:$0]  %s602, 128, %s599, %s587
        $region64: #{tpu_custom_call.1} parent=39 // pred_fallthru
          _
      $region40: #{tpu_custom_call.1} parent=5 // pred_fallthru
        _
      %p605 = scmp.le.s32.totalorder 2, %s21
      // Predicated region
      $region65: #{tpu_custom_call.1} parent=5 // pred_check
        %p606 = pneg %p605
      $region66: #{tpu_custom_call.1} parent=5 // pred_check_branch
        %608 = sbr.rel (%p606) target = $region68
      $region67: #{tpu_custom_call.1} parent=5 // pred_region
        %s609 = ssub.s32 %s21, 2
        // Predicated region
        $region69: #{tpu_custom_call.1} parent=67 // pred_check
          %p610 = pneg %p190
        $region70: #{tpu_custom_call.1} parent=67 // pred_check_branch
          %612 = sbr.rel (%p610) target = $region72
        $region71: #{tpu_custom_call.1} parent=67 // pred_region
          %s613 = sand.u32 %s175, 1
          %s614 = scalar_lea.sflag [#allocation9], %s613
          %s615 = sand.u32 %s175, 1
          %s616 = smul.addr %s615, 8
          %s617 = scalar_lea.vmem [#allocation13], %s616
          %618 = dma.done %s614, 128
        $region72: #{tpu_custom_call.1} parent=67 // pred_fallthru
          _
      $region68: #{tpu_custom_call.1} parent=5 // pred_fallthru
        _
    $region6: #{tpu_custom_call.1} parent=1 // loop_footer
      %s25 = sadd.s32 1, %s21
    $region7: #{tpu_custom_call.1} parent=1 // loop_footer_branch
      %20 = sbr.rel target = $region3
    $region8: #{tpu_custom_call.1} parent=1 // loop_exit
      _
    %619 = vsyncpa [#allocation8], 1
    %s620 = scalar_lea.sflag [#allocation8], 1
    %621 = vsyncpa %s620, 1
    %622 = vsyncpa [#allocation11], 1
    %s623 = scalar_lea.sflag [#allocation11], 1
    %624 = vsyncpa %s623, 1
    %625 = vsyncpa [#allocation9], 1
    %s626 = scalar_lea.sflag [#allocation9], 1
    %627 = vsyncpa %s626, 1

</llo_original>
